<compile_context>
chip_gen: v5e
topology: v5e:2x2
jax: 0.10.0
libtpu: 0.0.40
codegen_flags: <defaults>
</compile_context>

<pallas_src>
import functools

import jax
import jax.numpy as jnp
from jax.experimental import pallas as pl
from jax.experimental.pallas import tpu as pltpu

LANE = 128


# ----------------------------- Pallas kernel ------------------------------ #

def _fused_mlp_kernel(x_ref, w1_ref, wr_ref, b_ref, o_ref, *, n_layers):
    # x_ref : (rows, in_dim)              f32
    # w1_ref: (in_dim, PAD)               bf16   (first layer, pre-transposed)
    # wr_ref: (max(n_layers-1,1), PAD, PAD) bf16 (remaining layers, stacked)
    # b_ref : (n_layers, 1, PAD)          f32
    # o_ref : (rows, PAD)                 f32
    h = jnp.dot(x_ref[...].astype(jnp.bfloat16), w1_ref[...],
                preferred_element_type=jnp.float32)
    # ReLU on every layer: the reference's "skip activation on the last layer"
    # condition never fires, so this matches the PyTorch module exactly.
    h = jnp.maximum(h + b_ref[0], 0.0)
    for l in range(1, n_layers):                     # statically unrolled
        h = jnp.dot(h.astype(jnp.bfloat16), wr_ref[l - 1],
                    preferred_element_type=jnp.float32)
        h = jnp.maximum(h + b_ref[l], 0.0)
    o_ref[...] = h.astype(o_ref.dtype)


# ------------------------- parameter construction ------------------------- #

def xavier_normal(key, out_f, in_f, gain):
    std = gain * jnp.sqrt(2.0 / (in_f + out_f))
    return std * jax.random.normal(key, (out_f, in_f), dtype=jnp.float32)


def init_mlp_multi_objective(key, input_dim, output_dim, hidden_channels,
                             objectives, num_common_lyr):
    """PyTorch-layout params: W is (out_features, in_features), b is (out_features,)."""
    layer_channels = [input_dim] + list(hidden_channels) + [output_dim]
    gain = jnp.sqrt(2.0)  # nn.init.calculate_gain('relu')

    def make_linear(k, i):
        in_f, out_f = layer_channels[i], layer_channels[i + 1]
        kw, kb = jax.random.split(k)
        w = xavier_normal(kw, out_f, in_f, gain)
        bound = 1.0 / jnp.sqrt(jnp.float32(in_f))
        b = jax.random.uniform(kb, (out_f,), jnp.float32, -bound, bound)
        return w, b

    params = {"common": [], "heads": {obj: [] for obj in objectives}}
    n_layers = len(layer_channels) - 1
    keys_needed = num_common_lyr + len(objectives) * (n_layers - num_common_lyr)
    keys = jax.random.split(key, max(keys_needed, 1))
    kidx = 0
    for i in range(num_common_lyr):
        params["common"].append(make_linear(keys[kidx], i)); kidx += 1
    for obj in objectives:
        for i in range(num_common_lyr, n_layers):
            params["heads"][obj].append(make_linear(keys[kidx], i)); kidx += 1
    return params, layer_channels


# ------------------- one-time packing into the fused layout ---------------- #

def pack_fused_params(params, layer_channels, objectives, num_common_lyr,
                      weight_dtype=jnp.bfloat16):
    """Pre-transpose, head-stack, zero-pad and downcast all layers ONCE."""
    n_obj = len(objectives)
    n_layers = len(layer_channels) - 1
    in_dim = layer_channels[0]

    def fused_dim(i):  # width of the fused activation at boundary i
        return layer_channels[i] if i <= num_common_lyr else n_obj * layer_channels[i]

    # Only activation boundaries 1..n_layers live inside the kernel at PAD width.
    pad = LANE * pl.cdiv(max(fused_dim(i) for i in range(1, n_layers + 1)), LANE)

    def layer_block(l):
        din, dout = layer_channels[l], layer_channels[l + 1]
        row_dim = in_dim if l == 0 else pad
        Wp = jnp.zeros((row_dim, pad), jnp.float32)
        bp = jnp.zeros((1, pad), jnp.float32)
        if l < num_common_lyr:
            W, b = params["common"][l]                      # (dout, din), (dout,)
            Wp = Wp.at[:din, :dout].set(W.T)
            bp = bp.at[0, :dout].set(b)
        else:
            d = l - num_common_lyr
            for oi, obj in enumerate(objectives):
                W, b = params["heads"][obj][d]
                if d == 0:
                    # shared input -> stack along output columns
                    Wp = Wp.at[:din, oi * dout:(oi + 1) * dout].set(W.T)
                else:
                    # per-objective input slice -> per-objective output slice
                    Wp = Wp.at[oi * din:(oi + 1) * din,
                               oi * dout:(oi + 1) * dout].set(W.T)
                bp = bp.at[0, oi * dout:(oi + 1) * dout].set(b)
        return Wp, bp

    blocks = [layer_block(l) for l in range(n_layers)]
    w_first = blocks[0][0].astype(weight_dtype)             # (in_dim, PAD)
    rest = [blk[0] for blk in blocks[1:]]
    if rest:
        w_rest = jnp.stack(rest).astype(weight_dtype)        # (L-1, PAD, PAD)
    else:
        w_rest = jnp.zeros((1, pad, pad), weight_dtype)       # unused placeholder
    b_stacked = jnp.stack([blk[1] for blk in blocks])         # (L, 1, PAD) f32
    return w_first, w_rest, b_stacked, pad, n_layers


# ------------------------------ forward pass ------------------------------ #

def make_forward(w_first, w_rest, b_stacked, pad, n_layers, objectives,
                 output_dim, batch, input_dim, tile_b=256):
    n_obj = len(objectives)
    kernel = functools.partial(_fused_mlp_kernel, n_layers=n_layers)

    weight_bytes = int(w_first.size * w_first.dtype.itemsize
                       + w_rest.size * w_rest.dtype.itemsize
                       + b_stacked.size * b_stacked.dtype.itemsize)
    cost = pl.CostEstimate(
        flops=int(2 * batch * pad * pad * n_layers),
        transcendentals=0,
        bytes_accessed=int(weight_bytes + batch * input_dim * 4 + batch * pad * 4))

    # Scoped-VMEM headroom only matters if the packed slab ever grows large
    # (v5e default scoped VMEM is 16 MiB; v7x physical VMEM is only 64 MiB).
    vmem_limit = None
    if weight_bytes > 8 * 1024 * 1024:
        vmem_limit = int(min(3 * weight_bytes, 100 * 1024 * 1024))

    out_shape = jax.ShapeDtypeStruct((batch, pad), jnp.float32)

    if batch > tile_b:
        # Batch-tiled grid: weight slab stays VMEM-resident (constant
        # index_map), activation tiles stream with double-buffering, and the
        # batch axis is "parallel" so v7x's two TensorCores split the tiles.
        call = pl.pallas_call(
            kernel,
            out_shape=out_shape,
            grid=(pl.cdiv(batch, tile_b),),
            in_specs=[
                pl.BlockSpec((tile_b, input_dim), lambda i: (i, 0)),
                pl.BlockSpec(w_first.shape, lambda i: (0, 0)),
                pl.BlockSpec(w_rest.shape, lambda i: (0, 0, 0)),
                pl.BlockSpec(b_stacked.shape, lambda i: (0, 0, 0)),
            ],
            out_specs=pl.BlockSpec((tile_b, pad), lambda i: (i, 0)),
            compiler_params=pltpu.CompilerParams(
                dimension_semantics=("parallel",),
                vmem_limit_bytes=vmem_limit),
            cost_estimate=cost,
        )
    else:
        # Small batch: single fused program, everything resident in VMEM.
        vmem = pl.BlockSpec(memory_space=pltpu.MemorySpace.VMEM)
        call = pl.pallas_call(
            kernel,
            out_shape=out_shape,
            in_specs=[vmem, vmem, vmem, vmem],
            out_specs=vmem,
            compiler_params=pltpu.CompilerParams(vmem_limit_bytes=vmem_limit),
            cost_estimate=cost,
        )

    @jax.jit
    def forward(x):
        # NOTE: weights are closed over and baked into the executable; rebuild
        # `forward` (or thread weights as jit args) if parameters are updated.
        y = call(x, w_first, w_rest, b_stacked)
        # One slice + reshape instead of n_obj narrow slices.
        y = y[:, :n_obj * output_dim].reshape(batch, n_obj, output_dim)
        return {obj: y[:, oi, :] for oi, obj in enumerate(objectives)}

    return forward


# --------------------------------- main ----------------------------------- #

if __name__ == "__main__":
    # Small config consistent with the module's __init__.
    input_dim = 16
    output_dim = 8
    hidden_channels = [32, 32]
    objectives = ["perf", "power"]
    num_common_lyr = 1

    key = jax.random.PRNGKey(0)
    k_params, k_x1, k_x2 = jax.random.split(key, 3)
    params, layer_channels = init_mlp_multi_objective(
        k_params, input_dim, output_dim, hidden_channels, objectives,
        num_common_lyr)

    w_first, w_rest, b_stacked, pad, n_layers = pack_fused_params(
        params, layer_channels, objectives, num_common_lyr)

    # pure-JAX reference using the original (unpacked, f32) params
    def ref_forward(x):
        h = x
        for (w, b) in params["common"]:
            h = jnp.maximum(h @ w.T + b, 0.0)
        res = {}
        for obj in objectives:
            y = h
            for li, (w, b) in enumerate(params["heads"][obj]):
                y = y @ w.T + b
                if li + num_common_lyr != len(layer_channels) - 1:
                    y = jnp.maximum(y, 0.0)
            res[obj] = y
        return res

    # 1) small batch -> single-program fully fused path.
    batch = 4
    x = jax.random.normal(k_x1, (batch, input_dim), dtype=jnp.float32)
    forward = make_forward(w_first, w_rest, b_stacked, pad, n_layers,
                           objectives, output_dim, batch, input_dim)
    out = forward(x)
    jax.block_until_ready(out)
    ref = ref_forward(x)
    for obj in objectives:
        assert out[obj].shape == (batch, output_dim)
        # bf16 weights / bf16 MXU inputs with f32 accumulate -> loosened tol.
        assert jnp.allclose(out[obj], ref[obj], atol=5e-2, rtol=5e-2), obj

    # 2) larger batch -> batch-tiled grid path with VMEM-resident weights.
    batch_big = 512
    xb = jax.random.normal(k_x2, (batch_big, input_dim), dtype=jnp.float32)
    forward_big = make_forward(w_first, w_rest, b_stacked, pad, n_layers,
                               objectives, output_dim, batch_big, input_dim)
    out_big = forward_big(xb)
    jax.block_until_ready(out_big)
    ref_big = ref_forward(xb)
    for obj in objectives:
        assert out_big[obj].shape == (batch_big, output_dim)
        assert jnp.allclose(out_big[obj], ref_big[obj], atol=5e-2, rtol=5e-2), obj

    # TODO(synk): BatchNorm1d branch (bn=True) is dead code in the reference
    # forward (its gating condition never fires) and bn=False here, so it is
    # intentionally not implemented.

    print("KERNEL_OK")
</pallas_src>

<mosaic_0001>
module attributes {stable_mosaic.version = 11 : i64} {
  func.func @_fused_mlp_kernel(%arg0: memref<4x16xf32, #tpu.memory_space<vmem>>, %arg1: memref<16x128xbf16, #tpu.memory_space<vmem>>, %arg2: memref<2x128x128xbf16, #tpu.memory_space<vmem>>, %arg3: memref<3x1x128xf32, #tpu.memory_space<vmem>>, %arg4: memref<4x128xf32, #tpu.memory_space<vmem>>) attributes {dimension_semantics = [], scalar_prefetch = 0 : i64, scratch_operands = 0 : i64, tpu.core_type = #tpu.core_type<tc>} {
    %c0 = arith.constant 0 : index
    %c0_0 = arith.constant 0 : index
    %0 = vector.load %arg0[%c0, %c0_0] : memref<4x16xf32, #tpu.memory_space<vmem>>, vector<4x16xf32>
    %1 = arith.truncf %0 : vector<4x16xf32> to vector<4x16xbf16>
    %c0_1 = arith.constant 0 : index
    %c0_2 = arith.constant 0 : index
    %2 = vector.load %arg1[%c0_1, %c0_2] : memref<16x128xbf16, #tpu.memory_space<vmem>>, vector<16x128xbf16>
    %cst = arith.constant dense<0.000000e+00> : vector<4x128xf32>
    %3 = tpu.matmul %1, %2, %cst {dimension_numbers = #tpu.dot_dimension_numbers<[1], [0], [0], [1], [0, 0, 1, 1], [], []>} : vector<4x16xbf16>, vector<16x128xbf16>, vector<4x128xf32> -> vector<4x128xf32>
    %c0_3 = arith.constant 0 : index
    %c0_4 = arith.constant 0 : index
    %c0_5 = arith.constant 0 : index
    %4 = vector.load %arg3[%c0_3, %c0_4, %c0_5] : memref<3x1x128xf32, #tpu.memory_space<vmem>>, vector<1x1x128xf32>
    %5 = vector.shape_cast %4 : vector<1x1x128xf32> to vector<1x128xf32>
    %6 = vector.broadcast %5 : vector<1x128xf32> to vector<4x128xf32>
    %7 = arith.addf %3, %6 : vector<4x128xf32>
    %cst_6 = arith.constant 0.000000e+00 : f32
    %8 = vector.broadcast %cst_6 : f32 to vector<4x128xf32>
    %9 = arith.maximumf %7, %8 : vector<4x128xf32>
    %10 = arith.truncf %9 : vector<4x128xf32> to vector<4x128xbf16>
    %c0_7 = arith.constant 0 : index
    %c0_8 = arith.constant 0 : index
    %c0_9 = arith.constant 0 : index
    %11 = vector.load %arg2[%c0_7, %c0_8, %c0_9] : memref<2x128x128xbf16, #tpu.memory_space<vmem>>, vector<1x128x128xbf16>
    %12 = vector.shape_cast %11 : vector<1x128x128xbf16> to vector<128x128xbf16>
    %cst_10 = arith.constant dense<0.000000e+00> : vector<4x128xf32>
    %13 = tpu.matmul %10, %12, %cst_10 {dimension_numbers = #tpu.dot_dimension_numbers<[1], [0], [0], [1], [0, 0, 1, 1], [], []>} : vector<4x128xbf16>, vector<128x128xbf16>, vector<4x128xf32> -> vector<4x128xf32>
    %c1 = arith.constant 1 : index
    %c0_11 = arith.constant 0 : index
    %c0_12 = arith.constant 0 : index
    %14 = vector.load %arg3[%c1, %c0_11, %c0_12] : memref<3x1x128xf32, #tpu.memory_space<vmem>>, vector<1x1x128xf32>
    %15 = vector.shape_cast %14 : vector<1x1x128xf32> to vector<1x128xf32>
    %16 = vector.broadcast %15 : vector<1x128xf32> to vector<4x128xf32>
    %17 = arith.addf %13, %16 : vector<4x128xf32>
    %cst_13 = arith.constant 0.000000e+00 : f32
    %18 = vector.broadcast %cst_13 : f32 to vector<4x128xf32>
    %19 = arith.maximumf %17, %18 : vector<4x128xf32>
    %20 = arith.truncf %19 : vector<4x128xf32> to vector<4x128xbf16>
    %c1_14 = arith.constant 1 : index
    %c0_15 = arith.constant 0 : index
    %c0_16 = arith.constant 0 : index
    %21 = vector.load %arg2[%c1_14, %c0_15, %c0_16] : memref<2x128x128xbf16, #tpu.memory_space<vmem>>, vector<1x128x128xbf16>
    %22 = vector.shape_cast %21 : vector<1x128x128xbf16> to vector<128x128xbf16>
    %cst_17 = arith.constant dense<0.000000e+00> : vector<4x128xf32>
    %23 = tpu.matmul %20, %22, %cst_17 {dimension_numbers = #tpu.dot_dimension_numbers<[1], [0], [0], [1], [0, 0, 1, 1], [], []>} : vector<4x128xbf16>, vector<128x128xbf16>, vector<4x128xf32> -> vector<4x128xf32>
    %c2 = arith.constant 2 : index
    %c0_18 = arith.constant 0 : index
    %c0_19 = arith.constant 0 : index
    %24 = vector.load %arg3[%c2, %c0_18, %c0_19] : memref<3x1x128xf32, #tpu.memory_space<vmem>>, vector<1x1x128xf32>
    %25 = vector.shape_cast %24 : vector<1x1x128xf32> to vector<1x128xf32>
    %26 = vector.broadcast %25 : vector<1x128xf32> to vector<4x128xf32>
    %27 = arith.addf %23, %26 : vector<4x128xf32>
    %cst_20 = arith.constant 0.000000e+00 : f32
    %28 = vector.broadcast %cst_20 : f32 to vector<4x128xf32>
    %29 = arith.maximumf %27, %28 : vector<4x128xf32>
    %c0_21 = arith.constant 0 : index
    %c0_22 = arith.constant 0 : index
    %30 = vector.load %arg4[%c0_21, %c0_22] : memref<4x128xf32, #tpu.memory_space<vmem>>, vector<4x128xf32>
    tpu.vector_store %arg4[%c0_21, %c0_22], %29 {strides = array<i32>} : memref<4x128xf32, #tpu.memory_space<vmem>>, vector<4x128xf32>,
    return
  }
}

</mosaic_0001>

<llo_original>
// kernel: forward.1
$region0: #{forward.1}
  #allocation0 [shape = 'u32[]', space=smem, size = 0x4, offset = 0x4, fixed_abs, tag = 'smem constant byte address 0x4 - core index']
  #allocation1 [shape = 'u32[72,128]{1,0:T(1,128)}', space=vmem, size = 0x9000, scoped, tag = 'internal scratch']
  %s0 = inlined_call_operand.hbm [shape: f32[4,16], index: 0, kind: input, shape index: {}]
  %s1 = inlined_call_operand.hbm [shape: bf16[16,128], index: 1, kind: input, shape index: {}]
  %s2 = inlined_call_operand.hbm [shape: bf16[2,128,128], index: 2, kind: input, shape index: {}]
  %s3 = inlined_call_operand.hbm [shape: f32[3,1,128], index: 3, kind: input, shape index: {}]
  %s4 = inlined_call_operand.vmem [shape: f32[4,128], index: 4, kind: output, shape index: {}]
  %s5 = sld [smem:[#allocation0]]
  $region42: #{forward.1} parent=0
    _
  %s7 = ssub.s32 1, %s5
  %s8 = scalar_select 0, %s7, %s5
  $region1: #{forward.1} parent=0
    #allocation2 [shape = 'u8[2048]{0}', space=vmem, size = 0x800, scoped, tag = 'input window, operand 0, single buffered']
    #allocation3 [shape = 's32[1]{0}', space=sflag, size = 0x4, scoped, tag = 'scoped memory for forward.1']
    #allocation4 [shape = 'u8[4096]{0}', space=vmem, size = 0x1000, scoped, tag = 'input window, operand 1, single buffered']
    #allocation5 [shape = 's32[1]{0}', space=sflag, size = 0x4, scoped, tag = 'scoped memory for forward.1']
    #allocation6 [shape = 'u8[65536]{0}', space=vmem, size = 0x10000, scoped, tag = 'input window, operand 2, single buffered']
    #allocation7 [shape = 'u8[1536]{0}', space=vmem, size = 0x800, scoped, tag = 'input window, operand 3, single buffered']
    #allocation8 [shape = 's32[1]{0}', space=sflag, size = 0x4, scoped, tag = 'scoped memory for forward.1']
    %9 = vsyncpa [#allocation3], 0
    %10 = vsyncpa [#allocation5], 0
    %11 = vsyncpa [#allocation8], 0
    // Predicated region
    $region2: #{forward.1} parent=1 // pred_check
      _
    $region3: #{forward.1} parent=1 // pred_check_branch
      %13 = sbr.rel (0) target = $region5
    $region4: #{forward.1} parent=1 // pred_region
      %15 = vsyncadd [#allocation3], 0
      %s17 = sshll.u32 %s0, 4
      %s18 = int_to_ptr.hbm [resolvable:$true] %s17
      %s19 = sshll.u32 [#allocation2], 4
      %s20 = int_to_ptr.vmem [resolvable:$true] %s19
      %22 = dma.hbm_to_vmem [thread:$0]  %s18, 64, %s20, [#allocation3]
    $region5: #{forward.1} parent=1 // pred_fallthru
      _
    // Predicated region
    $region6: #{forward.1} parent=1 // pred_check
      _
    $region7: #{forward.1} parent=1 // pred_check_branch
      %24 = sbr.rel (0) target = $region9
    $region8: #{forward.1} parent=1 // pred_region
      %26 = vsyncadd [#allocation5], 0
      %s27 = sshll.u32 %s1, 4
      %s28 = int_to_ptr.hbm [resolvable:$true] %s27
      %s29 = sshll.u32 [#allocation4], 4
      %s30 = int_to_ptr.vmem [resolvable:$true] %s29
      %35 = dma.hbm_to_vmem [thread:$0]  %s28, 128, %s30, [#allocation5], 64, 64, 4
    $region9: #{forward.1} parent=1 // pred_fallthru
      _
    // Predicated region
    $region10: #{forward.1} parent=1 // pred_check
      _
    $region11: #{forward.1} parent=1 // pred_check_branch
      %37 = sbr.rel (0) target = $region13
    $region12: #{forward.1} parent=1 // pred_region
      %39 = vsyncadd [#allocation5], 0
      %s40 = sshll.u32 %s2, 4
      %s41 = int_to_ptr.hbm [resolvable:$true] %s40
      %s42 = sshll.u32 [#allocation6], 4
      %s43 = int_to_ptr.vmem [resolvable:$true] %s42
      %48 = dma.hbm_to_vmem [thread:$0]  %s41, 2048, %s43, [#allocation5], 64, 64, 4
    $region13: #{forward.1} parent=1 // pred_fallthru
      _
    // Predicated region
    $region14: #{forward.1} parent=1 // pred_check
      _
    $region15: #{forward.1} parent=1 // pred_check_branch
      %50 = sbr.rel (0) target = $region17
    $region16: #{forward.1} parent=1 // pred_region
      %52 = vsyncadd [#allocation8], 0
      %s53 = sshll.u32 %s3, 4
      %s54 = int_to_ptr.hbm [resolvable:$true] %s53
      %s55 = sshll.u32 [#allocation7], 4
      %s56 = int_to_ptr.vmem [resolvable:$true] %s55
      %61 = dma.hbm_to_vmem [thread:$0]  %s54, 48, %s56, [#allocation8], 16, 16, 1
    $region17: #{forward.1} parent=1 // pred_fallthru
      _
    // Predicated region
    $region18: #{forward.1} parent=1 // pred_check
      _
    $region19: #{forward.1} parent=1 // pred_check_branch
      %63 = sbr.rel (0) target = $region21
    $region20: #{forward.1} parent=1 // pred_region
      %65 = dma.done [#allocation3], 64
    $region21: #{forward.1} parent=1 // pred_fallthru
      _
    // Predicated region
    $region22: #{forward.1} parent=1 // pred_check
      _
    $region23: #{forward.1} parent=1 // pred_check_branch
      %67 = sbr.rel (0) target = $region25
    $region24: #{forward.1} parent=1 // pred_region
      %69 = dma.done [#allocation5], 128
    $region25: #{forward.1} parent=1 // pred_fallthru
      _
    // Predicated region
    $region26: #{forward.1} parent=1 // pred_check
      _
    $region27: #{forward.1} parent=1 // pred_check_branch
      %71 = sbr.rel (0) target = $region29
    $region28: #{forward.1} parent=1 // pred_region
      %73 = dma.done [#allocation5], 2048
    $region29: #{forward.1} parent=1 // pred_fallthru
      _
    // Predicated region
    $region30: #{forward.1} parent=1 // pred_check
      _
    $region31: #{forward.1} parent=1 // pred_check_branch
      %75 = sbr.rel (0) target = $region33
    $region32: #{forward.1} parent=1 // pred_region
      %77 = dma.done [#allocation8], 48
    $region33: #{forward.1} parent=1 // pred_fallthru
      _
    %v79 = vld [vmem:[#allocation2] sm:$0xf]
    %v80 = vpack.c.bf16 %v79, %v79
    %v81 = vld [vmem:[#allocation4] sm:$0xf]
    %v82 = vld [vmem:[#allocation4 + $0x4] sm:$0xf]
    %v83 = vld [vmem:[#allocation7] sm:$0x1]
    %v85 = vperm.slane %v83, 0
    %v89 = vunpack.c.l.b16 %v81
    %v90 = vunpack.c.l.b16 %v82
    %v91 = vpack.c.b16 %v90, %v89
    %vm93 = vcmask 130048
    %v95 = vsel %vm93, %v80, 0
    %97 = vmatpush.bf16.msra.mxu0 0
    %98 = vmatpush.bf16.msra.mxu0 0
    %99 = vmatpush.bf16.msra.mxu0 0
    %100 = vmatpush.bf16.msra.mxu0 0
    %101 = vmatpush.bf16.msra.mxu0 0
    %102 = vmatpush.bf16.msra.mxu0 0
    %103 = vmatpush.bf16.msra.mxu0 0
    %104 = vmatpush.bf16.msra.mxu0 %v91
    %105 = vmatmul.bf16.gmra.mxu0 %v95
    %v106 = vpop.f32.mrf.mxu0
    %v107 = vadd.f32 %v85, %v106
    %v108 = vpop.f32.mrf.mxu0
    %109 = vdwg.mxu0
    %v110 = vmax.f32 %v107, 0.0
    %v111 = vpack.c.bf16 %v110, %v110
    %v112 = vld [vmem:[#allocation6] sm:$0xf]
    %v113 = vld [vmem:[#allocation6 + $0x4] sm:$0xf]
    %v114 = vld [vmem:[#allocation6 + $0x8] sm:$0xf]
    %v115 = vld [vmem:[#allocation6 + $0xc] sm:$0xf]
    %v116 = vld [vmem:[#allocation6 + $0x10] sm:$0xf]
    %v117 = vld [vmem:[#allocation6 + $0x14] sm:$0xf]
    %v118 = vld [vmem:[#allocation6 + $0x18] sm:$0xf]
    %v119 = vld [vmem:[#allocation6 + $0x1c] sm:$0xf]
    %v120 = vld [vmem:[#allocation6 + $0x20] sm:$0xf]
    %v121 = vld [vmem:[#allocation6 + $0x24] sm:$0xf]
    %v122 = vld [vmem:[#allocation6 + $0x28] sm:$0xf]
    %v123 = vld [vmem:[#allocation6 + $0x2c] sm:$0xf]
    %v124 = vld [vmem:[#allocation6 + $0x30] sm:$0xf]
    %v125 = vld [vmem:[#allocation6 + $0x34] sm:$0xf]
    %v126 = vld [vmem:[#allocation6 + $0x38] sm:$0xf]
    %v127 = vld [vmem:[#allocation6 + $0x3c] sm:$0xf]
    %s128 = scalar_lea.vmem [#allocation7], 1
    %v129 = vld [vmem:[%s128] sm:$0x1]
    %v131 = vperm.slane %v129, 0
    %v149 = vunpack.c.l.b16 %v112
    %v150 = vunpack.c.l.b16 %v113
    %v151 = vunpack.c.l.b16 %v114
    %v152 = vunpack.c.l.b16 %v115
    %v153 = vunpack.c.l.b16 %v116
    %v154 = vunpack.c.l.b16 %v117
    %v155 = vunpack.c.l.b16 %v118
    %v156 = vunpack.c.l.b16 %v119
    %v157 = vunpack.c.l.b16 %v120
    %v158 = vunpack.c.l.b16 %v121
    %v159 = vunpack.c.l.b16 %v122
    %v160 = vunpack.c.l.b16 %v123
    %v161 = vunpack.c.l.b16 %v124
    %v162 = vunpack.c.l.b16 %v125
    %v163 = vunpack.c.l.b16 %v126
    %v164 = vunpack.c.l.b16 %v127
    %v165 = vpack.c.b16 %v150, %v149
    %v166 = vpack.c.b16 %v152, %v151
    %v167 = vpack.c.b16 %v154, %v153
    %v168 = vpack.c.b16 %v156, %v155
    %v169 = vpack.c.b16 %v158, %v157
    %v170 = vpack.c.b16 %v160, %v159
    %v171 = vpack.c.b16 %v162, %v161
    %v172 = vpack.c.b16 %v164, %v163
    %181 = vmatpush.bf16.msra.mxu0 %v172
    %182 = vmatpush.bf16.msra.mxu0 %v171
    %183 = vmatpush.bf16.msra.mxu0 %v170
    %184 = vmatpush.bf16.msra.mxu0 %v169
    %185 = vmatpush.bf16.msra.mxu0 %v168
    %186 = vmatpush.bf16.msra.mxu0 %v167
    %187 = vmatpush.bf16.msra.mxu0 %v166
    %188 = vmatpush.bf16.msra.mxu0 %v165
    %189 = vmatmul.bf16.gmra.mxu0 %v111
    %v190 = vpop.f32.mrf.mxu0
    %v191 = vadd.f32 %v131, %v190
    %v192 = vpop.f32.mrf.mxu0
    %193 = vdwg.mxu0
    %v194 = vmax.f32 %v191, 0.0
    %v195 = vpack.c.bf16 %v194, %v194
    %s196 = scalar_lea.vmem [#allocation6], 64
    %v197 = vld [vmem:[%s196] sm:$0xf]
    %v198 = vld [vmem:[%s196 + $0x4] sm:$0xf]
    %v199 = vld [vmem:[%s196 + $0x8] sm:$0xf]
    %v200 = vld [vmem:[%s196 + $0xc] sm:$0xf]
    %v201 = vld [vmem:[%s196 + $0x10] sm:$0xf]
    %v202 = vld [vmem:[%s196 + $0x14] sm:$0xf]
    %v203 = vld [vmem:[%s196 + $0x18] sm:$0xf]
    %v204 = vld [vmem:[%s196 + $0x1c] sm:$0xf]
    %v205 = vld [vmem:[%s196 + $0x20] sm:$0xf]
    %v206 = vld [vmem:[%s196 + $0x24] sm:$0xf]
    %v207 = vld [vmem:[%s196 + $0x28] sm:$0xf]
    %v208 = vld [vmem:[%s196 + $0x2c] sm:$0xf]
    %v209 = vld [vmem:[%s196 + $0x30] sm:$0xf]
    %v210 = vld [vmem:[%s196 + $0x34] sm:$0xf]
    %v211 = vld [vmem:[%s196 + $0x38] sm:$0xf]
    %v212 = vld [vmem:[%s196 + $0x3c] sm:$0xf]
    %s213 = scalar_lea.vmem [#allocation7], 2
    %v214 = vld [vmem:[%s213] sm:$0x1]
    %v216 = vperm.slane %v214, 0
    %v234 = vunpack.c.l.b16 %v197
    %v235 = vunpack.c.l.b16 %v198
    %v236 = vunpack.c.l.b16 %v199
    %v237 = vunpack.c.l.b16 %v200
    %v238 = vunpack.c.l.b16 %v201
    %v239 = vunpack.c.l.b16 %v202
    %v240 = vunpack.c.l.b16 %v203
    %v241 = vunpack.c.l.b16 %v204
    %v242 = vunpack.c.l.b16 %v205
    %v243 = vunpack.c.l.b16 %v206
    %v244 = vunpack.c.l.b16 %v207
    %v245 = vunpack.c.l.b16 %v208
    %v246 = vunpack.c.l.b16 %v209
    %v247 = vunpack.c.l.b16 %v210
    %v248 = vunpack.c.l.b16 %v211
    %v249 = vunpack.c.l.b16 %v212
    %v250 = vpack.c.b16 %v235, %v234
    %v251 = vpack.c.b16 %v237, %v236
    %v252 = vpack.c.b16 %v239, %v238
    %v253 = vpack.c.b16 %v241, %v240
    %v254 = vpack.c.b16 %v243, %v242
    %v255 = vpack.c.b16 %v245, %v244
    %v256 = vpack.c.b16 %v247, %v246
    %v257 = vpack.c.b16 %v249, %v248
    %266 = vmatpush.bf16.msra.mxu0 %v257
    %267 = vmatpush.bf16.msra.mxu0 %v256
    %268 = vmatpush.bf16.msra.mxu0 %v255
    %269 = vmatpush.bf16.msra.mxu0 %v254
    %270 = vmatpush.bf16.msra.mxu0 %v253
    %271 = vmatpush.bf16.msra.mxu0 %v252
    %272 = vmatpush.bf16.msra.mxu0 %v251
    %273 = vmatpush.bf16.msra.mxu0 %v250
    %274 = vmatmul.bf16.gmra.mxu0 %v195
    %v275 = vpop.f32.mrf.mxu0
    %v276 = vadd.f32 %v216, %v275
    %v277 = vpop.f32.mrf.mxu0
    %278 = vdwg.mxu0
    %v279 = vmax.f32 %v276, 0.0
    %280 = vst [vmem:[%s4] sm:$0xf] %v279
    // Predicated region
    $region34: #{forward.1} parent=1 // pred_check
      _
    $region35: #{forward.1} parent=1 // pred_check_branch
      %282 = sbr.rel (0) target = $region37
    $region36: #{forward.1} parent=1 // pred_region
      _
    $region37: #{forward.1} parent=1 // pred_fallthru
      _
    // Predicated region
    $region38: #{forward.1} parent=1 // pred_check
      _
    $region39: #{forward.1} parent=1 // pred_check_branch
      %284 = sbr.rel (0) target = $region41
    $region40: #{forward.1} parent=1 // pred_region
      _
    $region41: #{forward.1} parent=1 // pred_fallthru
      _
    %285 = vsyncpa [#allocation3], 1
    %286 = vsyncpa [#allocation5], 1
    %287 = vsyncpa [#allocation8], 1

</llo_original>
